<compile_context>
chip_gen: v7x
topology: tpu7x:2x2x1
jax: 0.10.0
libtpu: 0.0.40
codegen_flags: <defaults>
</compile_context>

<pallas_src>
import jax
import jax.numpy as jnp
from jax.experimental import pallas as pl
from jax.experimental.pallas import tpu as pltpu


def _copy_kernel(x_ref, o_ref):
    # Straight vld -> vst stream of one lane-dense 2D tile.
    o_ref[...] = x_ref[...]


def _pick_lane_dense_2d(total, fallback_lane):
    """Pick (rows, lane) for a flat contiguous buffer of `total` elements.

    Prefer a lane dim that is a large multiple of 128 (full, unmasked vregs).
    Otherwise fall back to the natural trailing dim, which BlockSpec accepts
    because the block then covers the full last dim.
    """
    for lane in (16384, 8192, 4096, 2048, 1024, 512, 256, 128):
        if total % lane == 0:
            return total // lane, lane
    return total // fallback_lane, fallback_lane


def _pick_row_tile(rows, lane, itemsize, target_bytes=2 << 20):
    """Row-tile size: multiple of 8, divides `rows`, block <= ~target_bytes.

    Keeps the double-buffered footprint (2*in + 2*out blocks) under ~8 MiB,
    which fits the scoped VMEM default on v5e/v6e/v7x without extra flags.
    """
    if rows % 8 != 0:
        # TODO(synk): rows not sublane-aligned -> single full-rows block; fine
        # for the spec shape (~364 KiB) but would need padding for huge inputs.
        return rows
    max_rows = max(8, ((target_bytes // (lane * itemsize)) // 8) * 8)
    if rows <= max_rows:
        return rows
    t = min(max_rows, rows - rows % 8)
    while t >= 8:
        if rows % t == 0:
            return t
        t -= 8
    return rows


def channel_split_view(x, groups=2):
    """Pallas equivalent of x.view(N, groups, C // groups, H, W)."""
    N, C, H, W = x.shape
    assert C % groups == 0
    c_half = C // groups

    total = N * C * H * W
    itemsize = jnp.dtype(x.dtype).itemsize

    rows, lane = _pick_lane_dense_2d(total, H * W)
    tile_r = _pick_row_tile(rows, lane, itemsize)
    grid = (rows // tile_r,)

    x2d = x.reshape(rows, lane)  # metadata-only for a contiguous input

    out2d = pl.pallas_call(
        _copy_kernel,
        out_shape=jax.ShapeDtypeStruct((rows, lane), x.dtype),
        grid_spec=pltpu.PrefetchScalarGridSpec(
            num_scalar_prefetch=0,
            grid=grid,
            in_specs=[pl.BlockSpec((tile_r, lane), lambda i: (i, 0))],
            out_specs=pl.BlockSpec((tile_r, lane), lambda i: (i, 0)),
        ),
        compiler_params=pltpu.CompilerParams(
            dimension_semantics=("parallel",),
        ),
        cost_estimate=pl.CostEstimate(
            flops=0,
            transcendentals=0,
            bytes_accessed=2 * total * itemsize,
        ),
    )(x2d)

    # The channel-split view itself is a metadata-only reshape of the copy.
    return out2d.reshape(N, groups, c_half, H, W)


class M:
    """JAX mirror of the PyTorch module M."""

    def forward(self, x84, x86, x90, x88, x89):
        # x86 = N, x90 = C // 2, x88 = H, x89 = W
        out = channel_split_view(x84, groups=2)
        assert out.shape == (x86, 2, x90, x88, x89)
        return out


if __name__ == "__main__":
    # Shapes exactly as in the spec: (1, 116, 28, 28) -> view(1, 2, 58, 28, 28)
    key = jax.random.PRNGKey(0)
    N, C, H, W = 1, 116, 28, 28
    x84 = jax.random.normal(key, (N, C, H, W), dtype=jnp.float32)

    m = M()
    out = m.forward(x84, N, C // 2, H, W)
    out = jax.block_until_ready(out)

    # Correctness check against a plain JAX reshape (torch .view on a
    # contiguous tensor == reshape).
    ref = x84.reshape(N, 2, C // 2, H, W)
    assert out.shape == (N, 2, C // 2, H, W), out.shape
    assert jnp.array_equal(out, ref), "mismatch vs reference reshape"

    print("KERNEL_OK")
</pallas_src>

<mosaic_0001>
module attributes {stable_mosaic.version = 11 : i64} {
  func.func @_copy_kernel(%arg0: i32, %arg1: memref<116x784xf32, #tpu.memory_space<vmem>>, %arg2: memref<116x784xf32, #tpu.memory_space<vmem>>) attributes {dimension_semantics = [#tpu.dimension_semantics<parallel>], iteration_bounds = array<i64: 1>, scalar_prefetch = 0 : i64, scratch_operands = 0 : i64, tpu.core_type = #tpu.core_type<tc>, window_params = [{transform_indices = @transform_0, window_bounds = array<i64: 116, 784>}, {transform_indices = @transform_1, window_bounds = array<i64: 116, 784>}]} {
    %c0 = arith.constant 0 : index
    %c0_0 = arith.constant 0 : index
    %0 = vector.load %arg1[%c0, %c0_0] : memref<116x784xf32, #tpu.memory_space<vmem>>, vector<116x784xf32>
    %c0_1 = arith.constant 0 : index
    %c0_2 = arith.constant 0 : index
    %1 = vector.load %arg2[%c0_1, %c0_2] : memref<116x784xf32, #tpu.memory_space<vmem>>, vector<116x784xf32>
    tpu.vector_store %arg2[%c0_1, %c0_2], %0 {strides = array<i32>} : memref<116x784xf32, #tpu.memory_space<vmem>>, vector<116x784xf32>,
    return
  }
  func.func @transform_0(%arg0: i32) -> (i32, i32) {
    %c0_i32 = arith.constant 0 : i32
    %c0_i32_0 = arith.constant 0 : i32
    return %arg0, %c0_i32 : i32, i32
  }
  func.func @transform_1(%arg0: i32) -> (i32, i32) {
    %c0_i32 = arith.constant 0 : i32
    %c0_i32_0 = arith.constant 0 : i32
    return %arg0, %c0_i32 : i32, i32
  }
}

</mosaic_0001>

<llo_original>
// kernel: tpu_custom_call.1
$region0: #{tpu_custom_call.1}
  #allocation0 [shape = 'u32[]', space=smem, size = 0x4, offset = 0x4, fixed_abs, tag = 'smem constant byte address 0x4 - core index']
  #allocation1 [shape = 'u32[144,128]{1,0:T(1,128)}', space=vmem, size = 0x12000, scoped, tag = 'internal scratch']
  %s0 = inlined_call_operand.vmem [shape: f32[116,784], index: 0, kind: input, shape index: {}]
  %s1 = inlined_call_operand.vmem [shape: f32[116,784], index: 1, kind: output, shape index: {}]
  %s2 = sld [smem:[#allocation0]]
  $region14: #{tpu_custom_call.1} parent=0
    _
  %s4 = ssub.s32 1, %s2
  %s5 = scalar_select 0, %s4, %s2
  // Predicated region
  $region2: #{tpu_custom_call.1} parent=0 // pred_check
    _
  $region3: #{tpu_custom_call.1} parent=0 // pred_check_branch
    %7 = sbr.rel (0) target = $region5
  $region4: #{tpu_custom_call.1} parent=0 // pred_region
    _
  $region5: #{tpu_custom_call.1} parent=0 // pred_fallthru
    _
  %v8 = vld [vmem:[%s0] sm:$0xff]
  %v9 = vld [vmem:[%s0 + $0x8] sm:$0xff]
  %v10 = vld [vmem:[%s0 + $0x10] sm:$0xff]
  %v11 = vld [vmem:[%s0 + $0x18] sm:$0xff]
  %v12 = vld [vmem:[%s0 + $0x20] sm:$0xff]
  %v13 = vld [vmem:[%s0 + $0x28] sm:$0xff]
  %v14 = vld [vmem:[%s0 + $0x30] sm:$0xff]
  %v15 = vld [vmem:[%s0 + $0x38] sm:$0xff]
  %v16 = vld [vmem:[%s0 + $0x40] sm:$0xff]
  %v17 = vld [vmem:[%s0 + $0x48] sm:$0xff]
  %v18 = vld [vmem:[%s0 + $0x50] sm:$0xff]
  %v19 = vld [vmem:[%s0 + $0x58] sm:$0xff]
  %v20 = vld [vmem:[%s0 + $0x60] sm:$0xff]
  %v21 = vld [vmem:[%s0 + $0x68] sm:$0xff]
  %v22 = vld [vmem:[%s0 + $0x70] sm:$0xff]
  %v23 = vld [vmem:[%s0 + $0x78] sm:$0xff]
  %v24 = vld [vmem:[%s0 + $0x80] sm:$0xff]
  %v25 = vld [vmem:[%s0 + $0x88] sm:$0xff]
  %v26 = vld [vmem:[%s0 + $0x90] sm:$0xff]
  %v27 = vld [vmem:[%s0 + $0x98] sm:$0xff]
  %v28 = vld [vmem:[%s0 + $0xa0] sm:$0xff]
  %v29 = vld [vmem:[%s0 + $0xa8] sm:$0xff]
  %v30 = vld [vmem:[%s0 + $0xb0] sm:$0xff]
  %v31 = vld [vmem:[%s0 + $0xb8] sm:$0xff]
  %v32 = vld [vmem:[%s0 + $0xc0] sm:$0xff]
  %v33 = vld [vmem:[%s0 + $0xc8] sm:$0xff]
  %v34 = vld [vmem:[%s0 + $0xd0] sm:$0xff]
  %v35 = vld [vmem:[%s0 + $0xd8] sm:$0xff]
  %v36 = vld [vmem:[%s0 + $0xe0] sm:$0xff]
  %v37 = vld [vmem:[%s0 + $0xe8] sm:$0xff]
  %v38 = vld [vmem:[%s0 + $0xf0] sm:$0xff]
  %v39 = vld [vmem:[%s0 + $0xf8] sm:$0xff]
  %v40 = vld [vmem:[%s0 + $0x100] sm:$0xff]
  %v41 = vld [vmem:[%s0 + $0x108] sm:$0xff]
  %v42 = vld [vmem:[%s0 + $0x110] sm:$0xff]
  %v43 = vld [vmem:[%s0 + $0x118] sm:$0xff]
  %v44 = vld [vmem:[%s0 + $0x120] sm:$0xff]
  %v45 = vld [vmem:[%s0 + $0x128] sm:$0xff]
  %v46 = vld [vmem:[%s0 + $0x130] sm:$0xff]
  %v47 = vld [vmem:[%s0 + $0x138] sm:$0xff]
  %v48 = vld [vmem:[%s0 + $0x140] sm:$0xff]
  %v49 = vld [vmem:[%s0 + $0x148] sm:$0xff]
  %v50 = vld [vmem:[%s0 + $0x150] sm:$0xff]
  %v51 = vld [vmem:[%s0 + $0x158] sm:$0xff]
  %v52 = vld [vmem:[%s0 + $0x160] sm:$0xff]
  %v53 = vld [vmem:[%s0 + $0x168] sm:$0xff]
  %v54 = vld [vmem:[%s0 + $0x170] sm:$0xff]
  %v55 = vld [vmem:[%s0 + $0x178] sm:$0xff]
  %v56 = vld [vmem:[%s0 + $0x180] sm:$0xff]
  %v57 = vld [vmem:[%s0 + $0x188] sm:$0xff]
  %v58 = vld [vmem:[%s0 + $0x190] sm:$0xff]
  %v59 = vld [vmem:[%s0 + $0x198] sm:$0xff]
  %v60 = vld [vmem:[%s0 + $0x1a0] sm:$0xff]
  %v61 = vld [vmem:[%s0 + $0x1a8] sm:$0xff]
  %v62 = vld [vmem:[%s0 + $0x1b0] sm:$0xff]
  %v63 = vld [vmem:[%s0 + $0x1b8] sm:$0xff]
  %v64 = vld [vmem:[%s0 + $0x1c0] sm:$0xff]
  %v65 = vld [vmem:[%s0 + $0x1c8] sm:$0xff]
  %v66 = vld [vmem:[%s0 + $0x1d0] sm:$0xff]
  %v67 = vld [vmem:[%s0 + $0x1d8] sm:$0xff]
  %v68 = vld [vmem:[%s0 + $0x1e0] sm:$0xff]
  %v69 = vld [vmem:[%s0 + $0x1e8] sm:$0xff]
  %v70 = vld [vmem:[%s0 + $0x1f0] sm:$0xff]
  %v71 = vld [vmem:[%s0 + $0x1f8] sm:$0xff]
  %v72 = vld [vmem:[%s0 + $0x200] sm:$0xff]
  %v73 = vld [vmem:[%s0 + $0x208] sm:$0xff]
  %v74 = vld [vmem:[%s0 + $0x210] sm:$0xff]
  %v75 = vld [vmem:[%s0 + $0x218] sm:$0xff]
  %v76 = vld [vmem:[%s0 + $0x220] sm:$0xff]
  %v77 = vld [vmem:[%s0 + $0x228] sm:$0xff]
  %v78 = vld [vmem:[%s0 + $0x230] sm:$0xff]
  %v79 = vld [vmem:[%s0 + $0x238] sm:$0xff]
  %v80 = vld [vmem:[%s0 + $0x240] sm:$0xff]
  %v81 = vld [vmem:[%s0 + $0x248] sm:$0xff]
  %v82 = vld [vmem:[%s0 + $0x250] sm:$0xff]
  %v83 = vld [vmem:[%s0 + $0x258] sm:$0xff]
  %v84 = vld [vmem:[%s0 + $0x260] sm:$0xff]
  %v85 = vld [vmem:[%s0 + $0x268] sm:$0xff]
  %v86 = vld [vmem:[%s0 + $0x270] sm:$0xff]
  %v87 = vld [vmem:[%s0 + $0x278] sm:$0xff]
  %v88 = vld [vmem:[%s0 + $0x280] sm:$0xff]
  %v89 = vld [vmem:[%s0 + $0x288] sm:$0xff]
  %v90 = vld [vmem:[%s0 + $0x290] sm:$0xff]
  %v91 = vld [vmem:[%s0 + $0x298] sm:$0xff]
  %v92 = vld [vmem:[%s0 + $0x2a0] sm:$0xff]
  %v93 = vld [vmem:[%s0 + $0x2a8] sm:$0xff]
  %v94 = vld [vmem:[%s0 + $0x2b0] sm:$0xff]
  %v95 = vld [vmem:[%s0 + $0x2b8] sm:$0xff]
  %v96 = vld [vmem:[%s0 + $0x2c0] sm:$0xff]
  %v97 = vld [vmem:[%s0 + $0x2c8] sm:$0xff]
  %v98 = vld [vmem:[%s0 + $0x2d0] sm:$0xff]
  %v99 = vld [vmem:[%s0 + $0x2d8] sm:$0xff]
  %v100 = vld [vmem:[%s0 + $0x2e0] sm:$0xff]
  %v101 = vld [vmem:[%s0 + $0x2e8] sm:$0xff]
  %v102 = vld [vmem:[%s0 + $0x2f0] sm:$0xff]
  %v103 = vld [vmem:[%s0 + $0x2f8] sm:$0xff]
  %v104 = vld [vmem:[%s0 + $0x300] sm:$0xff]
  %v105 = vld [vmem:[%s0 + $0x308] sm:$0xff]
  %v106 = vld [vmem:[%s0 + $0x310] sm:$0xf]
  %v107 = vld [vmem:[%s0 + $0x318] sm:$0xf]
  %v108 = vld [vmem:[%s0 + $0x320] sm:$0xf]
  %v109 = vld [vmem:[%s0 + $0x328] sm:$0xf]
  %v110 = vld [vmem:[%s0 + $0x330] sm:$0xf]
  %v111 = vld [vmem:[%s0 + $0x338] sm:$0xf]
  %v112 = vld [vmem:[%s0 + $0x340] sm:$0xf]
  %113 = vst [vmem:[%s1] sm:$0xff] %v8
  %114 = vst [vmem:[%s1 + $0x8] sm:$0xff] %v9
  %115 = vst [vmem:[%s1 + $0x10] sm:$0xff] %v10
  %116 = vst [vmem:[%s1 + $0x18] sm:$0xff] %v11
  %117 = vst [vmem:[%s1 + $0x20] sm:$0xff] %v12
  %118 = vst [vmem:[%s1 + $0x28] sm:$0xff] %v13
  %vm119 = vcmask 130048
  %120 = vst.msk [vmem:[%s1 + $0x30] sm:$0xff] %vm119, %v14
  %121 = vst [vmem:[%s1 + $0x38] sm:$0xff] %v15
  %122 = vst [vmem:[%s1 + $0x40] sm:$0xff] %v16
  %123 = vst [vmem:[%s1 + $0x48] sm:$0xff] %v17
  %124 = vst [vmem:[%s1 + $0x50] sm:$0xff] %v18
  %125 = vst [vmem:[%s1 + $0x58] sm:$0xff] %v19
  %126 = vst [vmem:[%s1 + $0x60] sm:$0xff] %v20
  %127 = vst.msk [vmem:[%s1 + $0x68] sm:$0xff] %vm119, %v21
  %128 = vst [vmem:[%s1 + $0x70] sm:$0xff] %v22
  %129 = vst [vmem:[%s1 + $0x78] sm:$0xff] %v23
  %130 = vst [vmem:[%s1 + $0x80] sm:$0xff] %v24
  %131 = vst [vmem:[%s1 + $0x88] sm:$0xff] %v25
  %132 = vst [vmem:[%s1 + $0x90] sm:$0xff] %v26
  %133 = vst [vmem:[%s1 + $0x98] sm:$0xff] %v27
  %134 = vst.msk [vmem:[%s1 + $0xa0] sm:$0xff] %vm119, %v28
  %135 = vst [vmem:[%s1 + $0xa8] sm:$0xff] %v29
  %136 = vst [vmem:[%s1 + $0xb0] sm:$0xff] %v30
  %137 = vst [vmem:[%s1 + $0xb8] sm:$0xff] %v31
  %138 = vst [vmem:[%s1 + $0xc0] sm:$0xff] %v32
  %139 = vst [vmem:[%s1 + $0xc8] sm:$0xff] %v33
  %140 = vst [vmem:[%s1 + $0xd0] sm:$0xff] %v34
  %141 = vst.msk [vmem:[%s1 + $0xd8] sm:$0xff] %vm119, %v35
  %142 = vst [vmem:[%s1 + $0xe0] sm:$0xff] %v36
  %143 = vst [vmem:[%s1 + $0xe8] sm:$0xff] %v37
  %144 = vst [vmem:[%s1 + $0xf0] sm:$0xff] %v38
  %145 = vst [vmem:[%s1 + $0xf8] sm:$0xff] %v39
  %146 = vst [vmem:[%s1 + $0x100] sm:$0xff] %v40
  %147 = vst [vmem:[%s1 + $0x108] sm:$0xff] %v41
  %148 = vst.msk [vmem:[%s1 + $0x110] sm:$0xff] %vm119, %v42
  %149 = vst [vmem:[%s1 + $0x118] sm:$0xff] %v43
  %150 = vst [vmem:[%s1 + $0x120] sm:$0xff] %v44
  %151 = vst [vmem:[%s1 + $0x128] sm:$0xff] %v45
  %152 = vst [vmem:[%s1 + $0x130] sm:$0xff] %v46
  %153 = vst [vmem:[%s1 + $0x138] sm:$0xff] %v47
  %154 = vst [vmem:[%s1 + $0x140] sm:$0xff] %v48
  %155 = vst.msk [vmem:[%s1 + $0x148] sm:$0xff] %vm119, %v49
  %156 = vst [vmem:[%s1 + $0x150] sm:$0xff] %v50
  %157 = vst [vmem:[%s1 + $0x158] sm:$0xff] %v51
  %158 = vst [vmem:[%s1 + $0x160] sm:$0xff] %v52
  %159 = vst [vmem:[%s1 + $0x168] sm:$0xff] %v53
  %160 = vst [vmem:[%s1 + $0x170] sm:$0xff] %v54
  %161 = vst [vmem:[%s1 + $0x178] sm:$0xff] %v55
  %162 = vst.msk [vmem:[%s1 + $0x180] sm:$0xff] %vm119, %v56
  %163 = vst [vmem:[%s1 + $0x188] sm:$0xff] %v57
  %164 = vst [vmem:[%s1 + $0x190] sm:$0xff] %v58
  %165 = vst [vmem:[%s1 + $0x198] sm:$0xff] %v59
  %166 = vst [vmem:[%s1 + $0x1a0] sm:$0xff] %v60
  %167 = vst [vmem:[%s1 + $0x1a8] sm:$0xff] %v61
  %168 = vst [vmem:[%s1 + $0x1b0] sm:$0xff] %v62
  %169 = vst.msk [vmem:[%s1 + $0x1b8] sm:$0xff] %vm119, %v63
  %170 = vst [vmem:[%s1 + $0x1c0] sm:$0xff] %v64
  %171 = vst [vmem:[%s1 + $0x1c8] sm:$0xff] %v65
  %172 = vst [vmem:[%s1 + $0x1d0] sm:$0xff] %v66
  %173 = vst [vmem:[%s1 + $0x1d8] sm:$0xff] %v67
  %174 = vst [vmem:[%s1 + $0x1e0] sm:$0xff] %v68
  %175 = vst [vmem:[%s1 + $0x1e8] sm:$0xff] %v69
  %176 = vst.msk [vmem:[%s1 + $0x1f0] sm:$0xff] %vm119, %v70
  %177 = vst [vmem:[%s1 + $0x1f8] sm:$0xff] %v71
  %178 = vst [vmem:[%s1 + $0x200] sm:$0xff] %v72
  %179 = vst [vmem:[%s1 + $0x208] sm:$0xff] %v73
  %180 = vst [vmem:[%s1 + $0x210] sm:$0xff] %v74
  %181 = vst [vmem:[%s1 + $0x218] sm:$0xff] %v75
  %182 = vst [vmem:[%s1 + $0x220] sm:$0xff] %v76
  %183 = vst.msk [vmem:[%s1 + $0x228] sm:$0xff] %vm119, %v77
  %184 = vst [vmem:[%s1 + $0x230] sm:$0xff] %v78
  %185 = vst [vmem:[%s1 + $0x238] sm:$0xff] %v79
  %186 = vst [vmem:[%s1 + $0x240] sm:$0xff] %v80
  %187 = vst [vmem:[%s1 + $0x248] sm:$0xff] %v81
  %188 = vst [vmem:[%s1 + $0x250] sm:$0xff] %v82
  %189 = vst [vmem:[%s1 + $0x258] sm:$0xff] %v83
  %190 = vst.msk [vmem:[%s1 + $0x260] sm:$0xff] %vm119, %v84
  %191 = vst [vmem:[%s1 + $0x268] sm:$0xff] %v85
  %192 = vst [vmem:[%s1 + $0x270] sm:$0xff] %v86
  %193 = vst [vmem:[%s1 + $0x278] sm:$0xff] %v87
  %194 = vst [vmem:[%s1 + $0x280] sm:$0xff] %v88
  %195 = vst [vmem:[%s1 + $0x288] sm:$0xff] %v89
  %196 = vst [vmem:[%s1 + $0x290] sm:$0xff] %v90
  %197 = vst.msk [vmem:[%s1 + $0x298] sm:$0xff] %vm119, %v91
  %198 = vst [vmem:[%s1 + $0x2a0] sm:$0xff] %v92
  %199 = vst [vmem:[%s1 + $0x2a8] sm:$0xff] %v93
  %200 = vst [vmem:[%s1 + $0x2b0] sm:$0xff] %v94
  %201 = vst [vmem:[%s1 + $0x2b8] sm:$0xff] %v95
  %202 = vst [vmem:[%s1 + $0x2c0] sm:$0xff] %v96
  %203 = vst [vmem:[%s1 + $0x2c8] sm:$0xff] %v97
  %204 = vst.msk [vmem:[%s1 + $0x2d0] sm:$0xff] %vm119, %v98
  %205 = vst [vmem:[%s1 + $0x2d8] sm:$0xff] %v99
  %206 = vst [vmem:[%s1 + $0x2e0] sm:$0xff] %v100
  %207 = vst [vmem:[%s1 + $0x2e8] sm:$0xff] %v101
  %208 = vst [vmem:[%s1 + $0x2f0] sm:$0xff] %v102
  %209 = vst [vmem:[%s1 + $0x2f8] sm:$0xff] %v103
  %210 = vst [vmem:[%s1 + $0x300] sm:$0xff] %v104
  %211 = vst.msk [vmem:[%s1 + $0x308] sm:$0xff] %vm119, %v105
  %212 = vst [vmem:[%s1 + $0x310] sm:$0xf] %v106
  %213 = vst [vmem:[%s1 + $0x318] sm:$0xf] %v107
  %214 = vst [vmem:[%s1 + $0x320] sm:$0xf] %v108
  %215 = vst [vmem:[%s1 + $0x328] sm:$0xf] %v109
  %216 = vst [vmem:[%s1 + $0x330] sm:$0xf] %v110
  %217 = vst [vmem:[%s1 + $0x338] sm:$0xf] %v111
  %vm218 = vcmask 125952
  %219 = vst.msk [vmem:[%s1 + $0x340] sm:$0xf] %vm218, %v112
  // Predicated region
  $region6: #{tpu_custom_call.1} parent=0 // pred_check
    _
  $region7: #{tpu_custom_call.1} parent=0 // pred_check_branch
    %221 = sbr.rel (0) target = $region9
  $region8: #{tpu_custom_call.1} parent=0 // pred_region
    _
  $region9: #{tpu_custom_call.1} parent=0 // pred_fallthru
    _
  // Predicated region
  $region10: #{tpu_custom_call.1} parent=0 // pred_check
    _
  $region11: #{tpu_custom_call.1} parent=0 // pred_check_branch
    %223 = sbr.rel (0) target = $region13
  $region12: #{tpu_custom_call.1} parent=0 // pred_region
    _
  $region13: #{tpu_custom_call.1} parent=0 // pred_fallthru
    _

</llo_original>
